<compile_context>
chip_gen: v7x
topology: tpu7x:2x2x1
jax: 0.10.0
libtpu: 0.0.40
codegen_flags: <defaults>
</compile_context>

<pallas_src>
import functools

import jax
import jax.numpy as jnp
from jax.experimental import pallas as pl
from jax.experimental.pallas import tpu as pltpu


def _round_up(x, m):
    return ((x + m - 1) // m) * m


def _evaluator_kernel(x_ref, w_ref, b_ref, o_ref, acc_ref):
    # x_ref: (TB, TK) VMEM   w_ref: (1, TK) VMEM   b_ref: (1,) SMEM
    # o_ref: (TB, 1)  VMEM   acc_ref: (TB, 1) f32 VMEM scratch
    k = pl.program_id(1)

    @pl.when(k == 0)
    def _():
        acc_ref[...] = jnp.zeros_like(acc_ref)

    # VPU multiply against the broadcast weight row + one lane-reduce per tile.
    # Avoids the N=1 MXU matmul and a (D, 1) weight layout that would waste
    # 127/128 lanes of every vreg.
    acc_ref[...] += jnp.sum(x_ref[...] * w_ref[...], axis=-1, keepdims=True)

    @pl.when(k == pl.num_programs(1) - 1)
    def _():
        o_ref[...] = (acc_ref[...] + b_ref[0]).astype(o_ref.dtype)


@functools.partial(jax.jit, static_argnames=("tb", "tk"))
def evaluator_forward(x, weight, bias, *, tb=1024, tk=1024):
    """
    x:      [B, D] float32
    weight: [1, D] float32  (PyTorch Linear layout: [out_features, in_features])
    bias:   [1]    float32
    returns [B, 1] float32  (value = x @ weight.T + bias)
    """
    B, D = x.shape

    # Batch tile (multiple of 8, sublane axis) and feature tile (multiple of
    # 128, lane axis), clamped so small problems stay a single block.
    TB = min(tb, _round_up(B, 8))
    TK = min(tk, _round_up(D, 128))
    B_pad = _round_up(B, TB)
    D_pad = _round_up(D, TK)

    if (B_pad, D_pad) != (B, D):
        x = jnp.pad(x, ((0, B_pad - B), (0, D_pad - D)))
        weight = jnp.pad(weight, ((0, 0), (0, D_pad - D)))

    grid = (B_pad // TB, D_pad // TK)  # reduction (feature) axis last

    out = pl.pallas_call(
        _evaluator_kernel,
        out_shape=jax.ShapeDtypeStruct((B_pad, 1), x.dtype),
        grid_spec=pltpu.PrefetchScalarGridSpec(
            num_scalar_prefetch=0,
            grid=grid,
            in_specs=[
                # x tile: pipelined / double-buffered over both grid axes.
                pl.BlockSpec((TB, TK), lambda i, k: (i, k)),
                # weight chunk: constant over the batch axis, tiny (TK*4 B) DMA.
                pl.BlockSpec((1, TK), lambda i, k: (0, k)),
                # bias: scalar in SMEM, no VMEM tile / DMA per stage.
                pl.BlockSpec(memory_space=pltpu.MemorySpace.SMEM),
            ],
            out_specs=pl.BlockSpec((TB, 1), lambda i, k: (i, 0)),
            scratch_shapes=[pltpu.VMEM((TB, 1), jnp.float32)],
        ),
        compiler_params=pltpu.CompilerParams(
            # Batch axis parallel (v7x: shard across its 2 TensorCores),
            # reduction axis arbitrary (accumulator carried across it).
            dimension_semantics=("parallel", "arbitrary"),
        ),
        cost_estimate=pl.CostEstimate(
            flops=2 * B_pad * D_pad,
            transcendentals=0,
            bytes_accessed=4 * (B_pad * D_pad + D_pad + B_pad),
        ),
    )(x, weight, bias)

    return out[:B]


if __name__ == "__main__":
    key = jax.random.PRNGKey(0)

    # --- Primary check: matches the PyTorch module exactly (weights/bias = 0) ---
    batch = 8
    input_size = 32
    x = jax.random.normal(key, (batch, input_size), dtype=jnp.float32)
    weight = jnp.zeros((1, input_size), dtype=jnp.float32)  # weight.data.fill_(0.0)
    bias = jnp.zeros((1,), dtype=jnp.float32)               # bias.data.fill_(0.0)

    out = evaluator_forward(x, weight, bias)
    out = jax.block_until_ready(out)
    ref = x @ weight.T + bias
    assert out.shape == (batch, 1), out.shape
    assert jnp.allclose(out, ref, atol=1e-6), "mismatch vs reference (zero init)"

    # --- Secondary check: nonzero params, non-multiple shapes, multi-tile grid ---
    k1, k2, k3 = jax.random.split(key, 3)
    B2, D2 = 777, 2309  # exercises K accumulation and tail padding
    x2 = jax.random.normal(k1, (B2, D2), dtype=jnp.float32)
    w2 = jax.random.normal(k2, (1, D2), dtype=jnp.float32) * 0.02
    b2 = jax.random.normal(k3, (1,), dtype=jnp.float32)

    out2 = jax.block_until_ready(evaluator_forward(x2, w2, b2))
    ref2 = x2 @ w2.T + b2
    assert out2.shape == (B2, 1), out2.shape
    assert jnp.allclose(out2, ref2, atol=1e-3, rtol=1e-5), "mismatch vs reference (tiled)"

    print("KERNEL_OK")
</pallas_src>

<mosaic_0001>
module attributes {stable_mosaic.version = 11 : i64} {
  func.func @_evaluator_kernel(%arg0: i32, %arg1: i32, %arg2: memref<8x128xf32, #tpu.memory_space<vmem>>, %arg3: memref<1x128xf32, #tpu.memory_space<vmem>>, %arg4: memref<1xf32, #tpu.memory_space<smem>>, %arg5: memref<8x1xf32, #tpu.memory_space<vmem>>, %arg6: memref<8x1xf32, #tpu.memory_space<vmem>>) attributes {dimension_semantics = [#tpu.dimension_semantics<parallel>, #tpu.dimension_semantics<arbitrary>], iteration_bounds = array<i64: 1, 1>, scalar_prefetch = 0 : i64, scratch_operands = 1 : i64, tpu.core_type = #tpu.core_type<tc>, window_params = [{transform_indices = @transform_0, window_bounds = array<i64: 8, 128>}, {transform_indices = @transform_1, window_bounds = array<i64: 1, 128>}, {transform_indices = @transform_2, window_bounds = array<i64: 1>}, {transform_indices = @transform_3, window_bounds = array<i64: 8, 1>}]} {
    %c0_i32 = arith.constant 0 : i32
    %0 = arith.cmpi eq, %arg1, %c0_i32 : i32
    %1 = arith.extui %0 : i1 to i32
    %c0_i32_0 = arith.constant 0 : i32
    %2 = arith.cmpi ne, %1, %c0_i32_0 : i32
    scf.if %2 {
      %cst_10 = arith.constant 0.000000e+00 : f32
      %15 = vector.broadcast %cst_10 : f32 to vector<8x1xf32>
      %c0_11 = arith.constant 0 : index
      %c0_12 = arith.constant 0 : index
      %16 = vector.load %arg6[%c0_11, %c0_12] : memref<8x1xf32, #tpu.memory_space<vmem>>, vector<8x1xf32>
      tpu.vector_store %arg6[%c0_11, %c0_12], %15 {strides = array<i32>} : memref<8x1xf32, #tpu.memory_space<vmem>>, vector<8x1xf32>,
    } else {
    }
    %c0 = arith.constant 0 : index
    %c0_1 = arith.constant 0 : index
    %3 = vector.load %arg6[%c0, %c0_1] : memref<8x1xf32, #tpu.memory_space<vmem>>, vector<8x1xf32>
    %c0_2 = arith.constant 0 : index
    %c0_3 = arith.constant 0 : index
    %4 = vector.load %arg2[%c0_2, %c0_3] : memref<8x128xf32, #tpu.memory_space<vmem>>, vector<8x128xf32>
    %c0_4 = arith.constant 0 : index
    %c0_5 = arith.constant 0 : index
    %5 = vector.load %arg3[%c0_4, %c0_5] : memref<1x128xf32, #tpu.memory_space<vmem>>, vector<1x128xf32>
    %6 = vector.broadcast %5 : vector<1x128xf32> to vector<8x128xf32>
    %7 = arith.mulf %4, %6 : vector<8x128xf32>
    %cst = arith.constant dense<0.000000e+00> : vector<8xf32>
    %8 = vector.multi_reduction <add>, %7, %cst [1] : vector<8x128xf32> to vector<8xf32>
    %9 = vector.shape_cast %8 : vector<8xf32> to vector<8x1xf32>
    %10 = arith.addf %3, %9 : vector<8x1xf32>
    %c0_6 = arith.constant 0 : index
    %c0_7 = arith.constant 0 : index
    %11 = vector.load %arg6[%c0_6, %c0_7] : memref<8x1xf32, #tpu.memory_space<vmem>>, vector<8x1xf32>
    tpu.vector_store %arg6[%c0_6, %c0_7], %10 {strides = array<i32>} : memref<8x1xf32, #tpu.memory_space<vmem>>, vector<8x1xf32>,
    %c0_i32_8 = arith.constant 0 : i32
    %12 = arith.cmpi eq, %arg1, %c0_i32_8 : i32
    %13 = arith.extui %12 : i1 to i32
    %c0_i32_9 = arith.constant 0 : i32
    %14 = arith.cmpi ne, %13, %c0_i32_9 : i32
    scf.if %14 {
      %c0_10 = arith.constant 0 : index
      %c0_11 = arith.constant 0 : index
      %15 = vector.load %arg6[%c0_10, %c0_11] : memref<8x1xf32, #tpu.memory_space<vmem>>, vector<8x1xf32>
      %c0_12 = arith.constant 0 : index
      %16 = memref.load %arg4[%c0_12] : memref<1xf32, #tpu.memory_space<smem>>
      %17 = vector.broadcast %16 : f32 to vector<8x1xf32>
      %18 = arith.addf %15, %17 : vector<8x1xf32>
      %c0_13 = arith.constant 0 : index
      %c0_14 = arith.constant 0 : index
      %19 = vector.load %arg5[%c0_13, %c0_14] : memref<8x1xf32, #tpu.memory_space<vmem>>, vector<8x1xf32>
      tpu.vector_store %arg5[%c0_13, %c0_14], %18 {strides = array<i32>} : memref<8x1xf32, #tpu.memory_space<vmem>>, vector<8x1xf32>,
    } else {
    }
    return
  }
  func.func @transform_0(%arg0: i32, %arg1: i32) -> (i32, i32) {
    %c0_i32 = arith.constant 0 : i32
    return %arg0, %arg1 : i32, i32
  }
  func.func @transform_1(%arg0: i32, %arg1: i32) -> (i32, i32) {
    %c0_i32 = arith.constant 0 : i32
    %c0_i32_0 = arith.constant 0 : i32
    return %c0_i32, %arg1 : i32, i32
  }
  func.func @transform_2(%arg0: i32, %arg1: i32) -> i32 {
    %c0_i32 = arith.constant 0 : i32
    %c0_i32_0 = arith.constant 0 : i32
    return %c0_i32 : i32
  }
  func.func @transform_3(%arg0: i32, %arg1: i32) -> (i32, i32) {
    %c0_i32 = arith.constant 0 : i32
    %c0_i32_0 = arith.constant 0 : i32
    return %arg0, %c0_i32 : i32, i32
  }
}

</mosaic_0001>

<llo_original>
// kernel: evaluator_forward.1
$region0: #{evaluator_forward.1}
  #allocation0 [shape = 'u32[]', space=smem, size = 0x4, offset = 0x4, fixed_abs, tag = 'smem constant byte address 0x4 - core index']
  #allocation1 [shape = 'u32[144,128]{1,0:T(1,128)}', space=vmem, size = 0x12000, scoped, tag = 'internal scratch']
  #allocation2 [shape = 'f32[8,1]{1,0:T(8,128)}', space=vmem, size = 0x1000, scoped, tag = 'scratch operand']
  #allocation3 [shape = 'f32[1]{0:T(128)S(6)}', space=smem, size = 0x200, scoped, tag = 'scoped memory for evaluator_forward.1']
  %s0 = inlined_call_operand.vmem [shape: f32[8,128], index: 0, kind: input, shape index: {}]
  %s1 = inlined_call_operand.vmem [shape: f32[1,128], index: 1, kind: input, shape index: {}]
  %s2 = inlined_call_operand.<no memory space> [shape: f32[1], index: 2, kind: input, shape index: {}]
  %s3 = inlined_call_operand.vmem [shape: f32[8,1], index: 3, kind: output, shape index: {}]
  %s4 = sld [smem:[#allocation0]]
  $region30: #{evaluator_forward.1} parent=0
    _
  %s6 = ssub.s32 1, %s4
  %s7 = scalar_select 0, %s6, %s4
  %8 = sst [smem:[#allocation3]] %s2
  // Predicated region
  $region2: #{evaluator_forward.1} parent=0 // pred_check
    _
  $region3: #{evaluator_forward.1} parent=0 // pred_check_branch
    %10 = sbr.rel (0) target = $region5
  $region4: #{evaluator_forward.1} parent=0 // pred_region
    _
  $region5: #{evaluator_forward.1} parent=0 // pred_fallthru
    _
  // Predicated region
  $region6: #{evaluator_forward.1} parent=0 // pred_check
    _
  $region7: #{evaluator_forward.1} parent=0 // pred_check_branch
    %12 = sbr.rel (0) target = $region9
  $region8: #{evaluator_forward.1} parent=0 // pred_region
    _
  $region9: #{evaluator_forward.1} parent=0 // pred_fallthru
    _
  // Predicated region
  $region10: #{evaluator_forward.1} parent=0 // pred_check
    _
  $region11: #{evaluator_forward.1} parent=0 // pred_check_branch
    %14 = sbr.rel (0) target = $region13
  $region12: #{evaluator_forward.1} parent=0 // pred_region
    _
  $region13: #{evaluator_forward.1} parent=0 // pred_fallthru
    _
  %p15 = scmp.eq.s32.totalorder 0, 0
  // Predicated region
  $region14: #{evaluator_forward.1} parent=0 // pred_check
    %p16 = pneg %p15
  $region15: #{evaluator_forward.1} parent=0 // pred_check_branch
    %18 = sbr.rel (%p16) target = $region17
  $region16: #{evaluator_forward.1} parent=0 // pred_region
    %vm19 = vcmask 7168
    %20 = vst.msk [vmem:[#allocation2] sm:$0xff] %vm19, 0.0
  $region17: #{evaluator_forward.1} parent=0 // pred_fallthru
    _
  %v21 = vld [vmem:[#allocation2] sm:$0xff]
  %v22 = vld [vmem:[%s0] sm:$0xff]
  %v23 = vld [vmem:[%s1] sm:$0x1]
  %v25 = vlaneseq
  %v26 = vshrl.u32 %v25, 7
  %v27 = vsub.s32 0, %v26
  %v28 = vrot.slane %v23, %v27
  %v30 = vmul.f32 %v22, %v28
  %31 = vadd.xlane.f32.xlu0 %v30
  %v32 = vpop.xlane.xlu0 %31
  %v33 = vadd.f32 %v21, %v32
  %vm34 = vcmask 7168
  %35 = vst.msk [vmem:[#allocation2] sm:$0xff] %vm34, %v33
  // Predicated region
  $region18: #{evaluator_forward.1} parent=0 // pred_check
    %p36 = pneg %p15
  $region19: #{evaluator_forward.1} parent=0 // pred_check_branch
    %38 = sbr.rel (%p36) target = $region21
  $region20: #{evaluator_forward.1} parent=0 // pred_region
    %v39 = vld [vmem:[#allocation2] sm:$0xff]
    %s40 = sld [smem:[#allocation3]]
    %v41 = vstv %s40
    %v42 = vadd.f32 %v39, %v41
    %43 = vst.msk [vmem:[%s3] sm:$0xff] %vm34, %v42
  $region21: #{evaluator_forward.1} parent=0 // pred_fallthru
    _
  // Predicated region
  $region22: #{evaluator_forward.1} parent=0 // pred_check
    _
  $region23: #{evaluator_forward.1} parent=0 // pred_check_branch
    %45 = sbr.rel (0) target = $region25
  $region24: #{evaluator_forward.1} parent=0 // pred_region
    _
  $region25: #{evaluator_forward.1} parent=0 // pred_fallthru
    _
  // Predicated region
  $region26: #{evaluator_forward.1} parent=0 // pred_check
    _
  $region27: #{evaluator_forward.1} parent=0 // pred_check_branch
    %47 = sbr.rel (0) target = $region29
  $region28: #{evaluator_forward.1} parent=0 // pred_region
    _
  $region29: #{evaluator_forward.1} parent=0 // pred_fallthru
    _

</llo_original>
